<compile_context>
chip_gen: v5e
topology: v5e:2x2
jax: 0.10.0
libtpu: 0.0.40
codegen_flags: <defaults>
</compile_context>

<pallas_src>
import functools

import jax
import jax.numpy as jnp
from jax.experimental import pallas as pl
from jax.experimental.pallas import tpu as pltpu

KERNEL_SIZE = 320
STRIDE = 160          # == KERNEL_SIZE // 2  -> every frame is two adjacent 160-halves
PAD = 80
HALF = STRIDE
C1 = 16
C2 = 8


def _round_up(n, m):
    return ((n + m - 1) // m) * m


def _spectrogram_kernel(h_ref, nxt_ref, w1lo_ref, w1hi_ref, w2_ref, w3_ref, o_ref):
    """Fused conv1 (overlap-dedup'd framed matmul) + conv2 + conv3, ReLU after each.

    h_ref   : [1, TM, 160]  halves H[t0 + j],      j in [0, TM)
    nxt_ref : [1,  8, 160]  halves H[t0 + TM + j], j in [0, 8)   (only row 0 is needed)
    o_ref   : [1, n_mels, TM]  lane-dense output tile (frame axis on the 128 lanes)
    """
    halves = h_ref[0]                                            # [TM, 160]

    # conv1: out1[t] = H[t] @ w1[:160] + H[t+1] @ w1[160:]
    lo = jnp.dot(halves, w1lo_ref[...],
                 preferred_element_type=jnp.float32)             # [TM, 16]
    hi_same = jnp.dot(halves, w1hi_ref[...],
                      preferred_element_type=jnp.float32)        # [TM, 16] = H[t0+j]    @ w1_hi
    hi_next = jnp.dot(nxt_ref[0], w1hi_ref[...],
                      preferred_element_type=jnp.float32)        # [8, 16]  = H[t0+TM+j] @ w1_hi

    tm = halves.shape[0]
    c1 = lo.shape[1]
    # shift the *small* [TM,16] hi-contribution up by one frame (cheap sublane shift)
    hi_all = jnp.concatenate([hi_same, hi_next], axis=0)         # [TM+8, 16]
    hi = hi_all[1:tm + 1, :]                                     # [TM, 16] = H[t0+j+1] @ w1_hi

    h = jnp.maximum(lo + hi, 0.0)                                # [TM, 16]
    h = jnp.maximum(jnp.dot(h, w2_ref[...],
                            preferred_element_type=jnp.float32), 0.0)   # [TM, 8]
    h = jnp.maximum(jnp.dot(h, w3_ref[...],
                            preferred_element_type=jnp.float32), 0.0)   # [TM, n_mels]

    # transpose in-kernel (XLU) so the HBM store is lane-dense along the frame axis
    o_ref[...] = jnp.transpose(h).astype(o_ref.dtype)[None, :, :]


@functools.partial(jax.jit, static_argnames=("tm",))
def trainable_spectrogram(x, w1, w2, w3, *, tm=2048):
    """
    x  : [B, L] float32 raw audio
    w1 : [320, 16]     conv1 weight [16, 1, 320]  -> reshaped/transposed to [320, 16]
    w2 : [16, 8]       conv2 weight [8, 16, 1]    -> squeezed + transposed
    w3 : [8, n_mels]   conv3 weight [n_mels, 8, 1]-> squeezed + transposed
    returns [B, n_mels, T] float32,  T = (L + 2*80 - 320)//160 + 1
    """
    B, L = x.shape
    n_mels = w3.shape[1]
    T = (L + 2 * PAD - KERNEL_SIZE) // STRIDE + 1

    # Frame tile: multiple of 128 (lane-dense output stores), big enough to amortize
    # per-grid-step overhead, small enough for every generation's scoped VMEM.
    tm = max(128, (tm // 128) * 128)
    tm_t = min(tm, _round_up(T, 128))
    T_pad = _round_up(T, tm_t)

    # 160-sample halves of the padded signal: frame t = [H[t], H[t+1]].
    # The padded/duplicated frames array is never written to HBM.
    n_half = T_pad + 8                       # +8 rows keep the last tile's "next" block in-bounds
    total = n_half * HALF
    x_pad = jnp.pad(x, ((0, 0), (PAD, total - L - PAD)))
    halves = x_pad.reshape(B, n_half, HALF)  # [B, n_half, 160]

    w1_lo = w1[:HALF, :]                     # [160, 16]
    w1_hi = w1[HALF:, :]                     # [160, 16]

    nb = tm_t // 8                           # block-index scale for the size-8 "next" block
    grid = (B, T_pad // tm_t)

    out = pl.pallas_call(
        _spectrogram_kernel,
        out_shape=jax.ShapeDtypeStruct((B, n_mels, T_pad), jnp.float32),
        grid_spec=pltpu.PrefetchScalarGridSpec(
            num_scalar_prefetch=0,
            grid=grid,
            in_specs=[
                # main halves tile: H[i*tm_t : (i+1)*tm_t]
                pl.BlockSpec((1, tm_t, HALF), lambda b, i: (b, i, 0)),
                # first halves of the NEXT tile: H[(i+1)*tm_t : (i+1)*tm_t + 8]
                pl.BlockSpec((1, 8, HALF), lambda b, i: (b, (i + 1) * nb, 0)),
                pl.BlockSpec((HALF, C1), lambda b, i: (0, 0)),
                pl.BlockSpec((HALF, C1), lambda b, i: (0, 0)),
                pl.BlockSpec((C1, C2), lambda b, i: (0, 0)),
                pl.BlockSpec((C2, n_mels), lambda b, i: (0, 0)),
            ],
            out_specs=pl.BlockSpec((1, n_mels, tm_t), lambda b, i: (b, 0, i)),
        ),
        compiler_params=pltpu.CompilerParams(
            dimension_semantics=("parallel", "parallel")),
    )(halves, halves, w1_lo, w1_hi, w2, w3)

    return out[:, :, :T]                     # already [B, n_mels, T]: no transpose pass


def _reference(x, w1, w2, w3):
    """Pure-JAX reference of the same math (framed conv)."""
    B, L = x.shape
    T = (L + 2 * PAD - KERNEL_SIZE) // STRIDE + 1
    x_pad = jnp.pad(x, ((0, 0), (PAD, PAD)))
    idx = jnp.arange(T)[:, None] * STRIDE + jnp.arange(KERNEL_SIZE)[None, :]
    frames = x_pad[:, idx]                                # [B, T, 320]
    h = jnp.maximum(jnp.einsum("btk,kc->btc", frames, w1), 0.0)
    h = jnp.maximum(jnp.einsum("btc,cd->btd", h, w2), 0.0)
    h = jnp.maximum(jnp.einsum("btd,dm->btm", h, w3), 0.0)
    return jnp.transpose(h, (0, 2, 1))                    # [B, n_mels, T]


if __name__ == "__main__":
    key = jax.random.PRNGKey(0)
    k_x, k1, k2, k3 = jax.random.split(key, 4)

    B, L = 2, 1600                 # small: 10 output frames per example
    n_mels = 32                    # config['AUDIO']['n_mels'] stand-in

    x = jax.random.normal(k_x, (B, L), dtype=jnp.float32)

    # Conv weights in matmul form: conv weight [out, in, k] -> [in*k, out].
    w1 = jax.random.normal(k1, (KERNEL_SIZE, C1), dtype=jnp.float32) \
        * (1.0 / KERNEL_SIZE) ** 0.5
    w2 = jax.random.normal(k2, (C1, C2), dtype=jnp.float32) \
        * (1.0 / C1) ** 0.5
    w3 = jax.random.normal(k3, (C2, n_mels), dtype=jnp.float32) \
        * (1.0 / C2) ** 0.5

    out = trainable_spectrogram(x, w1, w2, w3)
    out = jax.block_until_ready(out)

    ref = jax.block_until_ready(_reference(x, w1, w2, w3))
    T = (L + 2 * PAD - KERNEL_SIZE) // STRIDE + 1
    assert out.shape == (B, n_mels, T), out.shape
    assert jnp.allclose(out, ref, atol=1e-4, rtol=1e-4), "mismatch vs reference"

    print("KERNEL_OK")
</pallas_src>

<mosaic_0001>
module attributes {stable_mosaic.version = 11 : i64} {
  func.func @_spectrogram_kernel(%arg0: i32, %arg1: i32, %arg2: memref<1x128x160xf32, #tpu.memory_space<vmem>>, %arg3: memref<1x8x160xf32, #tpu.memory_space<vmem>>, %arg4: memref<160x16xf32, #tpu.memory_space<vmem>>, %arg5: memref<160x16xf32, #tpu.memory_space<vmem>>, %arg6: memref<16x8xf32, #tpu.memory_space<vmem>>, %arg7: memref<8x32xf32, #tpu.memory_space<vmem>>, %arg8: memref<1x32x128xf32, #tpu.memory_space<vmem>>) attributes {dimension_semantics = [#tpu.dimension_semantics<parallel>, #tpu.dimension_semantics<parallel>], iteration_bounds = array<i64: 2, 1>, scalar_prefetch = 0 : i64, scratch_operands = 0 : i64, tpu.core_type = #tpu.core_type<tc>, window_params = [{transform_indices = @transform_0, window_bounds = array<i64: 1, 128, 160>}, {transform_indices = @transform_1, window_bounds = array<i64: 1, 8, 160>}, {pipeline_mode = #tpu.pipeline_mode<synchronous>, transform_indices = @transform_2, window_bounds = array<i64: 160, 16>}, {pipeline_mode = #tpu.pipeline_mode<synchronous>, transform_indices = @transform_3, window_bounds = array<i64: 160, 16>}, {pipeline_mode = #tpu.pipeline_mode<synchronous>, transform_indices = @transform_4, window_bounds = array<i64: 16, 8>}, {pipeline_mode = #tpu.pipeline_mode<synchronous>, transform_indices = @transform_5, window_bounds = array<i64: 8, 32>}, {transform_indices = @transform_6, window_bounds = array<i64: 1, 32, 128>}]} {
    %c0 = arith.constant 0 : index
    %c0_0 = arith.constant 0 : index
    %c0_1 = arith.constant 0 : index
    %0 = vector.load %arg2[%c0, %c0_0, %c0_1] : memref<1x128x160xf32, #tpu.memory_space<vmem>>, vector<1x128x160xf32>
    %1 = vector.shape_cast %0 : vector<1x128x160xf32> to vector<128x160xf32>
    %c0_2 = arith.constant 0 : index
    %c0_3 = arith.constant 0 : index
    %2 = vector.load %arg4[%c0_2, %c0_3] : memref<160x16xf32, #tpu.memory_space<vmem>>, vector<160x16xf32>
    %cst = arith.constant dense<0.000000e+00> : vector<128x16xf32>
    %3 = tpu.matmul %1, %2, %cst {dimension_numbers = #tpu.dot_dimension_numbers<[1], [0], [0], [1], [0, 0, 1, 1], [], []>} : vector<128x160xf32>, vector<160x16xf32>, vector<128x16xf32> -> vector<128x16xf32>
    %c0_4 = arith.constant 0 : index
    %c0_5 = arith.constant 0 : index
    %4 = vector.load %arg5[%c0_4, %c0_5] : memref<160x16xf32, #tpu.memory_space<vmem>>, vector<160x16xf32>
    %cst_6 = arith.constant dense<0.000000e+00> : vector<128x16xf32>
    %5 = tpu.matmul %1, %4, %cst_6 {dimension_numbers = #tpu.dot_dimension_numbers<[1], [0], [0], [1], [0, 0, 1, 1], [], []>} : vector<128x160xf32>, vector<160x16xf32>, vector<128x16xf32> -> vector<128x16xf32>
    %c0_7 = arith.constant 0 : index
    %c0_8 = arith.constant 0 : index
    %c0_9 = arith.constant 0 : index
    %6 = vector.load %arg3[%c0_7, %c0_8, %c0_9] : memref<1x8x160xf32, #tpu.memory_space<vmem>>, vector<1x8x160xf32>
    %7 = vector.shape_cast %6 : vector<1x8x160xf32> to vector<8x160xf32>
    %c0_10 = arith.constant 0 : index
    %c0_11 = arith.constant 0 : index
    %8 = vector.load %arg5[%c0_10, %c0_11] : memref<160x16xf32, #tpu.memory_space<vmem>>, vector<160x16xf32>
    %cst_12 = arith.constant dense<0.000000e+00> : vector<8x16xf32>
    %9 = tpu.matmul %7, %8, %cst_12 {dimension_numbers = #tpu.dot_dimension_numbers<[1], [0], [0], [1], [0, 0, 1, 1], [], []>} : vector<8x160xf32>, vector<160x16xf32>, vector<8x16xf32> -> vector<8x16xf32>
    %10 = tpu.concatenate %5, %9 in 0 : vector<128x16xf32>, vector<8x16xf32> -> vector<136x16xf32>
    %11 = vector.extract_strided_slice %10 {offsets = [1, 0], sizes = [128, 16], strides = [1, 1]} : vector<136x16xf32> to vector<128x16xf32>
    %12 = arith.addf %3, %11 : vector<128x16xf32>
    %cst_13 = arith.constant 0.000000e+00 : f32
    %13 = vector.broadcast %cst_13 : f32 to vector<128x16xf32>
    %14 = arith.maximumf %12, %13 : vector<128x16xf32>
    %c0_14 = arith.constant 0 : index
    %c0_15 = arith.constant 0 : index
    %15 = vector.load %arg6[%c0_14, %c0_15] : memref<16x8xf32, #tpu.memory_space<vmem>>, vector<16x8xf32>
    %cst_16 = arith.constant dense<0.000000e+00> : vector<128x8xf32>
    %16 = tpu.matmul %14, %15, %cst_16 {dimension_numbers = #tpu.dot_dimension_numbers<[1], [0], [0], [1], [0, 0, 1, 1], [], []>} : vector<128x16xf32>, vector<16x8xf32>, vector<128x8xf32> -> vector<128x8xf32>
    %cst_17 = arith.constant 0.000000e+00 : f32
    %17 = vector.broadcast %cst_17 : f32 to vector<128x8xf32>
    %18 = arith.maximumf %16, %17 : vector<128x8xf32>
    %c0_18 = arith.constant 0 : index
    %c0_19 = arith.constant 0 : index
    %19 = vector.load %arg7[%c0_18, %c0_19] : memref<8x32xf32, #tpu.memory_space<vmem>>, vector<8x32xf32>
    %cst_20 = arith.constant dense<0.000000e+00> : vector<128x32xf32>
    %20 = tpu.matmul %18, %19, %cst_20 {dimension_numbers = #tpu.dot_dimension_numbers<[1], [0], [0], [1], [0, 0, 1, 1], [], []>} : vector<128x8xf32>, vector<8x32xf32>, vector<128x32xf32> -> vector<128x32xf32>
    %cst_21 = arith.constant 0.000000e+00 : f32
    %21 = vector.broadcast %cst_21 : f32 to vector<128x32xf32>
    %22 = arith.maximumf %20, %21 : vector<128x32xf32>
    %23 = tpu.transpose %22, [1, 0] : vector<128x32xf32> -> vector<32x128xf32>
    %24 = vector.shape_cast %23 : vector<32x128xf32> to vector<1x32x128xf32>
    %c0_22 = arith.constant 0 : index
    %c0_23 = arith.constant 0 : index
    %c0_24 = arith.constant 0 : index
    %25 = vector.load %arg8[%c0_22, %c0_23, %c0_24] : memref<1x32x128xf32, #tpu.memory_space<vmem>>, vector<1x32x128xf32>
    tpu.vector_store %arg8[%c0_22, %c0_23, %c0_24], %24 {strides = array<i32>} : memref<1x32x128xf32, #tpu.memory_space<vmem>>, vector<1x32x128xf32>,
    return
  }
  func.func @transform_0(%arg0: i32, %arg1: i32) -> (i32, i32, i32) {
    %c0_i32 = arith.constant 0 : i32
    %c0_i32_0 = arith.constant 0 : i32
    return %arg0, %arg1, %c0_i32 : i32, i32, i32
  }
  func.func @transform_1(%arg0: i32, %arg1: i32) -> (i32, i32, i32) {
    %c1_i32 = arith.constant 1 : i32
    %0 = arith.addi %arg1, %c1_i32 : i32
    %c16_i32 = arith.constant 16 : i32
    %1 = arith.muli %0, %c16_i32 : i32
    %c0_i32 = arith.constant 0 : i32
    %c0_i32_0 = arith.constant 0 : i32
    return %arg0, %1, %c0_i32 : i32, i32, i32
  }
  func.func @transform_2(%arg0: i32, %arg1: i32) -> (i32, i32) {
    %c0_i32 = arith.constant 0 : i32
    %c0_i32_0 = arith.constant 0 : i32
    %c0_i32_1 = arith.constant 0 : i32
    return %c0_i32, %c0_i32_0 : i32, i32
  }
  func.func @transform_3(%arg0: i32, %arg1: i32) -> (i32, i32) {
    %c0_i32 = arith.constant 0 : i32
    %c0_i32_0 = arith.constant 0 : i32
    %c0_i32_1 = arith.constant 0 : i32
    return %c0_i32, %c0_i32_0 : i32, i32
  }
  func.func @transform_4(%arg0: i32, %arg1: i32) -> (i32, i32) {
    %c0_i32 = arith.constant 0 : i32
    %c0_i32_0 = arith.constant 0 : i32
    %c0_i32_1 = arith.constant 0 : i32
    return %c0_i32, %c0_i32_0 : i32, i32
  }
  func.func @transform_5(%arg0: i32, %arg1: i32) -> (i32, i32) {
    %c0_i32 = arith.constant 0 : i32
    %c0_i32_0 = arith.constant 0 : i32
    %c0_i32_1 = arith.constant 0 : i32
    return %c0_i32, %c0_i32_0 : i32, i32
  }
  func.func @transform_6(%arg0: i32, %arg1: i32) -> (i32, i32, i32) {
    %c0_i32 = arith.constant 0 : i32
    %c0_i32_0 = arith.constant 0 : i32
    return %arg0, %c0_i32, %arg1 : i32, i32, i32
  }
}

</mosaic_0001>

<llo_original>
// kernel: trainable_spectrogram.1
$region0: #{trainable_spectrogram.1}
  #allocation0 [shape = 'u32[]', space=smem, size = 0x4, offset = 0x4, fixed_abs, tag = 'smem constant byte address 0x4 - core index']
  #allocation1 [shape = 'u32[72,128]{1,0:T(1,128)}', space=vmem, size = 0x9000, scoped, tag = 'internal scratch']
  %s0 = inlined_call_operand.vmem [shape: f32[2,136,160], index: 0, kind: input, shape index: {}, may-alias: {0,1}]
  %s1 = inlined_call_operand.vmem [shape: f32[2,136,160], index: 1, kind: input, shape index: {}, may-alias: {0,1}]
  %s2 = inlined_call_operand.vmem [shape: f32[160,16], index: 2, kind: input, shape index: {}]
  %s3 = inlined_call_operand.vmem [shape: f32[160,16], index: 3, kind: input, shape index: {}]
  %s4 = inlined_call_operand.vmem [shape: f32[16,8], index: 4, kind: input, shape index: {}]
  %s5 = inlined_call_operand.vmem [shape: f32[8,32], index: 5, kind: input, shape index: {}]
  %s6 = inlined_call_operand.vmem [shape: f32[2,32,128], index: 6, kind: output, shape index: {}]
  %s7 = sld [smem:[#allocation0]]
  $region57: #{trainable_spectrogram.1} parent=0
    _
  %s9 = ssub.s32 1, %s7
  %s10 = scalar_select 0, %s9, %s7
  loop: start=0, step=1, limit=4
  $region2: #{trainable_spectrogram.1} parent=0 // loop_pre_header
    _
  $region3: #{trainable_spectrogram.1} parent=0 // loop_header
    %s12 = sphi 0, %s16
    %p13 = scmp.ge.s32.totalorder %s12, 4
    %s19 = sphi 0, %s31
    %s20 = sphi 0, %s27
    %s21 = sphi 0, %s19
    %s22 = sphi 0, %s20
    %s23 = sphi 0, %s21
    %s24 = sphi 0, %s22
    %s36 = sphi 0, %s38
    %s39 = sphi 0, %s36
    %s40 = sphi 0, %s39
    %s56 = sphi 0, %s40
    %s68 = sphi 0, %s70
    %s71 = sphi 0, %s68
    %s72 = sphi 0, %s71
    %s88 = sphi 0, %s72
    %s92 = sphi 0, %s92
    %s94 = sphi 0, %s92
    %s95 = sphi 0, %s94
    %s109 = sphi 0, %s95
    %s113 = sphi 0, %s113
    %s115 = sphi 0, %s113
    %s116 = sphi 0, %s115
    %s130 = sphi 0, %s116
    %s134 = sphi 0, %s134
    %s136 = sphi 0, %s134
    %s137 = sphi 0, %s136
    %s151 = sphi 0, %s137
    %s155 = sphi 0, %s155
    %s157 = sphi 0, %s155
    %s158 = sphi 0, %s157
    %s172 = sphi 0, %s158
    %s180 = sphi 0, %s182
    %s183 = sphi 0, %s180
    %s184 = sphi 0, %s183
    %s200 = sphi 0, %s184
  $region4: #{trainable_spectrogram.1} parent=0 // loop_header_branch
    %15 = sbr.rel (%p13) target = $region8
  $region5: #{trainable_spectrogram.1} parent=0 // loop_body
    %s17 = ssub.s32 %s12, 1
    %s18 = ssub.s32 %s12, 2
    %s25 = sadd.s32 1, %s20
    %p26 = scmp.ge.s32.totalorder %s25, 1
    %s27 = scalar_select %p26, 0, %s25
    %s28 = sadd.s32 1, %s19
    %s29 = scalar_select %p26, %s28, %s19
    %p30 = scmp.ge.s32.totalorder %s29, 2
    %s31 = scalar_select %p30, 0, %s29
    %s32 = ssub.s32 %s19, %s31
    %s33 = ssub.s32 %s20, %s27
    %s34 = sor.u32 %s32, %s33
    %p35 = scmp.eq.s32.totalorder %s34, 0
    %s37 = sadd.s32 %s36, 1
    %s38 = scalar_select %p35, %s36, %s37
    %p41 = pneg %p35
    %p42 = scmp.eq.s32.totalorder %s12, 1
    %p43 = por %p41, %p42
    %p44 = scmp.ne.s32.totalorder %s36, %s39
    %p45 = scmp.eq.s32.totalorder %s12, 0
    %p46 = por %p44, %p45
    %p47 = scmp.ne.s32.totalorder %s36, %s39
    %p48 = scmp.eq.s32.totalorder %s17, 1
    %p49 = por %p47, %p48
    %p50 = scmp.ne.s32.totalorder %s39, %s40
    %p51 = scmp.eq.s32.totalorder %s17, 0
    %p52 = por %p50, %p51
    %p53 = scmp.ne.s32.totalorder %s39, %s40
    %p54 = scmp.eq.s32.totalorder %s18, 1
    %p55 = por %p53, %p54
    %p57 = scmp.ne.s32.totalorder %s40, %s56
    %p58 = scmp.eq.s32.totalorder %s18, 0
    %p59 = por %p57, %p58
    %s60 = sadd.s32 %s20, 1
    %s61 = smul.u32 %s60, 16
    %s62 = sadd.s32 %s27, 1
    %s63 = smul.u32 %s62, 16
    %s64 = ssub.s32 %s19, %s31
    %s65 = ssub.s32 %s61, %s63
    %s66 = sor.u32 %s64, %s65
    %p67 = scmp.eq.s32.totalorder %s66, 0
    %s69 = sadd.s32 %s68, 1
    %s70 = scalar_select %p67, %s68, %s69
    %p73 = pneg %p67
    %p74 = scmp.eq.s32.totalorder %s12, 1
    %p75 = por %p73, %p74
    %p76 = scmp.ne.s32.totalorder %s68, %s71
    %p77 = scmp.eq.s32.totalorder %s12, 0
    %p78 = por %p76, %p77
    %p79 = scmp.ne.s32.totalorder %s68, %s71
    %p80 = scmp.eq.s32.totalorder %s17, 1
    %p81 = por %p79, %p80
    %p82 = scmp.ne.s32.totalorder %s71, %s72
    %p83 = scmp.eq.s32.totalorder %s17, 0
    %p84 = por %p82, %p83
    %p85 = scmp.ne.s32.totalorder %s71, %s72
    %p86 = scmp.eq.s32.totalorder %s18, 1
    %p87 = por %p85, %p86
    %p89 = scmp.ne.s32.totalorder %s72, %s88
    %p90 = scmp.eq.s32.totalorder %s18, 0
    %p91 = por %p89, %p90
    %s93 = sadd.s32 %s92, 1
    %p96 = scmp.eq.s32.totalorder %s12, 1
    %p97 = scmp.ne.s32.totalorder %s92, %s94
    %p98 = scmp.eq.s32.totalorder %s12, 0
    %p99 = por %p97, %p98
    %p100 = scmp.ne.s32.totalorder %s92, %s94
    %p101 = scmp.eq.s32.totalorder %s17, 1
    %p102 = por %p100, %p101
    %p103 = scmp.ne.s32.totalorder %s94, %s95
    %p104 = scmp.eq.s32.totalorder %s17, 0
    %p105 = por %p103, %p104
    %p106 = scmp.ne.s32.totalorder %s94, %s95
    %p107 = scmp.eq.s32.totalorder %s18, 1
    %p108 = por %p106, %p107
    %p110 = scmp.ne.s32.totalorder %s95, %s109
    %p111 = scmp.eq.s32.totalorder %s18, 0
    %p112 = por %p110, %p111
    %s114 = sadd.s32 %s113, 1
    %p117 = scmp.eq.s32.totalorder %s12, 1
    %p118 = scmp.ne.s32.totalorder %s113, %s115
    %p119 = scmp.eq.s32.totalorder %s12, 0
    %p120 = por %p118, %p119
    %p121 = scmp.ne.s32.totalorder %s113, %s115
    %p122 = scmp.eq.s32.totalorder %s17, 1
    %p123 = por %p121, %p122
    %p124 = scmp.ne.s32.totalorder %s115, %s116
    %p125 = scmp.eq.s32.totalorder %s17, 0
    %p126 = por %p124, %p125
    %p127 = scmp.ne.s32.totalorder %s115, %s116
    %p128 = scmp.eq.s32.totalorder %s18, 1
    %p129 = por %p127, %p128
    %p131 = scmp.ne.s32.totalorder %s116, %s130
    %p132 = scmp.eq.s32.totalorder %s18, 0
    %p133 = por %p131, %p132
    %s135 = sadd.s32 %s134, 1
    %p138 = scmp.eq.s32.totalorder %s12, 1
    %p139 = scmp.ne.s32.totalorder %s134, %s136
    %p140 = scmp.eq.s32.totalorder %s12, 0
    %p141 = por %p139, %p140
    %p142 = scmp.ne.s32.totalorder %s134, %s136
    %p143 = scmp.eq.s32.totalorder %s17, 1
    %p144 = por %p142, %p143
    %p145 = scmp.ne.s32.totalorder %s136, %s137
    %p146 = scmp.eq.s32.totalorder %s17, 0
    %p147 = por %p145, %p146
    %p148 = scmp.ne.s32.totalorder %s136, %s137
    %p149 = scmp.eq.s32.totalorder %s18, 1
    %p150 = por %p148, %p149
    %p152 = scmp.ne.s32.totalorder %s137, %s151
    %p153 = scmp.eq.s32.totalorder %s18, 0
    %p154 = por %p152, %p153
    %s156 = sadd.s32 %s155, 1
    %p159 = scmp.eq.s32.totalorder %s12, 1
    %p160 = scmp.ne.s32.totalorder %s155, %s157
    %p161 = scmp.eq.s32.totalorder %s12, 0
    %p162 = por %p160, %p161
    %p163 = scmp.ne.s32.totalorder %s155, %s157
    %p164 = scmp.eq.s32.totalorder %s17, 1
    %p165 = por %p163, %p164
    %p166 = scmp.ne.s32.totalorder %s157, %s158
    %p167 = scmp.eq.s32.totalorder %s17, 0
    %p168 = por %p166, %p167
    %p169 = scmp.ne.s32.totalorder %s157, %s158
    %p170 = scmp.eq.s32.totalorder %s18, 1
    %p171 = por %p169, %p170
    %p173 = scmp.ne.s32.totalorder %s158, %s172
    %p174 = scmp.eq.s32.totalorder %s18, 0
    %p175 = por %p173, %p174
    %s176 = ssub.s32 %s19, %s31
    %s177 = ssub.s32 %s20, %s27
    %s178 = sor.u32 %s176, %s177
    %p179 = scmp.eq.s32.totalorder %s178, 0
    %s181 = sadd.s32 %s180, 1
    %s182 = scalar_select %p179, %s180, %s181
    %p185 = pneg %p179
    %p186 = scmp.eq.s32.totalorder %s12, 1
    %p187 = por %p185, %p186
    %p188 = scmp.ne.s32.totalorder %s180, %s183
    %p189 = scmp.eq.s32.totalorder %s12, 0
    %p190 = por %p188, %p189
    %p191 = scmp.ne.s32.totalorder %s180, %s183
    %p192 = scmp.eq.s32.totalorder %s17, 1
    %p193 = por %p191, %p192
    %p194 = scmp.ne.s32.totalorder %s183, %s184
    %p195 = scmp.eq.s32.totalorder %s17, 0
    %p196 = por %p194, %p195
    %p197 = scmp.ne.s32.totalorder %s183, %s184
    %p198 = scmp.eq.s32.totalorder %s18, 1
    %p199 = por %p197, %p198
    %p201 = scmp.ne.s32.totalorder %s184, %s200
    %p202 = scmp.eq.s32.totalorder %s18, 0
    %p203 = por %p201, %p202
    %p204 = scmp.le.s32.totalorder 1, %s12
    %p205 = scmp.lt.s32.totalorder %s12, 3
    %p206 = pnand %p204, %p205
    %p207 = pneg %p206
    // Predicated region
    $region9: #{trainable_spectrogram.1} parent=5 // pred_check
      _
    $region10: #{trainable_spectrogram.1} parent=5 // pred_check_branch
      %209 = sbr.rel (%p206) target = $region12
    $region11: #{trainable_spectrogram.1} parent=5 // pred_region
      %s210 = ssub.s32 %s12, 1
      // Predicated region
      $region13: #{trainable_spectrogram.1} parent=11 // pred_check
        %p211 = pneg %p105
      $region14: #{trainable_spectrogram.1} parent=11 // pred_check_branch
        %213 = sbr.rel (%p211) target = $region16
      $region15: #{trainable_spectrogram.1} parent=11 // pred_region
        _
      $region16: #{trainable_spectrogram.1} parent=11 // pred_fallthru
        _
      // Predicated region
      $region17: #{trainable_spectrogram.1} parent=11 // pred_check
        %p214 = pneg %p126
      $region18: #{trainable_spectrogram.1} parent=11 // pred_check_branch
        %216 = sbr.rel (%p214) target = $region20
      $region19: #{trainable_spectrogram.1} parent=11 // pred_region
        _
      $region20: #{trainable_spectrogram.1} parent=11 // pred_fallthru
        _
      // Predicated region
      $region21: #{trainable_spectrogram.1} parent=11 // pred_check
        %p217 = pneg %p147
      $region22: #{trainable_spectrogram.1} parent=11 // pred_check_branch
        %219 = sbr.rel (%p217) target = $region24
      $region23: #{trainable_spectrogram.1} parent=11 // pred_region
        _
      $region24: #{trainable_spectrogram.1} parent=11 // pred_fallthru
        _
      // Predicated region
      $region25: #{trainable_spectrogram.1} parent=11 // pred_check
        %p220 = pneg %p168
      $region26: #{trainable_spectrogram.1} parent=11 // pred_check_branch
        %222 = sbr.rel (%p220) target = $region28
      $region27: #{trainable_spectrogram.1} parent=11 // pred_region
        _
      $region28: #{trainable_spectrogram.1} parent=11 // pred_fallthru
        _
    $region12: #{trainable_spectrogram.1} parent=5 // pred_fallthru
      _
    %p223 = scmp.lt.s32.totalorder %s12, 2
    // Predicated region
    $region29: #{trainable_spectrogram.1} parent=5 // pred_check
      %p224 = pneg %p223
    $region30: #{trainable_spectrogram.1} parent=5 // pred_check_branch
      %226 = sbr.rel (%p224) target = $region32
    $region31: #{trainable_spectrogram.1} parent=5 // pred_region
      // Predicated region
      $region33: #{trainable_spectrogram.1} parent=31 // pred_check
        %p227 = pneg %p46
      $region34: #{trainable_spectrogram.1} parent=31 // pred_check_branch
        %229 = sbr.rel (%p227) target = $region36
      $region35: #{trainable_spectrogram.1} parent=31 // pred_region
        %s230 = smul.u32 16, %s20
        %s231 = ssub.s32 17, %s230
        %p232 = scmp.lt.s32.totalorder %s231, 16
        %s233 = scalar_select %p232, %s231, 16
        %s234 = smul.u32 8, %s233
        %s235 = smul.u32 %s234, 2
        %p236 = scmp.lt.s32.totalorder %s19, 1
        %s237 = scalar_select %p236, %s19, 1
        %p238 = scmp.lt.s32.totalorder %s230, 16
        %s239 = scalar_select %p238, %s230, 16
        %s240 = smul.addr %s239, 2
        %s241 = smul.addr %s237, 34
        %s242 = sadd.s32 %s240, %s241
        %s243 = smul.addr %s242, 8
        %s244 = scalar_lea.vmem %s0, %s243
        %s245 = smul.u32 16, %s20
        %s246 = ssub.s32 17, %s245
        %p247 = scmp.lt.s32.totalorder %s246, 16
        %s248 = scalar_select %p247, %s246, 16
        %s249 = smul.u32 8, %s248
        %s250 = smul.u32 %s249, 2
      $region36: #{trainable_spectrogram.1} parent=31 // pred_fallthru
        _
      // Predicated region
      $region37: #{trainable_spectrogram.1} parent=31 // pred_check
        %p251 = pneg %p78
      $region38: #{trainable_spectrogram.1} parent=31 // pred_check_branch
        %253 = sbr.rel (%p251) target = $region40
      $region39: #{trainable_spectrogram.1} parent=31 // pred_region
        %s254 = sadd.s32 %s20, 1
        %s255 = smul.u32 %s254, 16
        %p256 = scmp.lt.s32.totalorder %s19, 1
        %s257 = scalar_select %p256, %s19, 1
        %p258 = scmp.lt.s32.totalorder %s255, 16
        %s259 = scalar_select %p258, %s255, 16
        %s260 = smul.addr %s259, 2
        %s261 = smul.addr %s257, 34
        %s262 = sadd.s32 %s260, %s261
        %s263 = smul.addr %s262, 8
        %s264 = scalar_lea.vmem %s1, %s263
        %s265 = sadd.s32 %s20, 1
        %s266 = smul.u32 %s265, 16
      $region40: #{trainable_spectrogram.1} parent=31 // pred_fallthru
        _
    $region32: #{trainable_spectrogram.1} parent=5 // pred_fallthru
      _
    %p267 = scmp.le.s32.totalorder 1, %s12
    %p268 = scmp.lt.s32.totalorder %s12, 3
    %p269 = pnand %p267, %p268
    %p270 = pneg %p269
    // Predicated region
    $region41: #{trainable_spectrogram.1} parent=5 // pred_check
      _
    $region42: #{trainable_spectrogram.1} parent=5 // pred_check_branch
      %272 = sbr.rel (%p269) target = $region44
    $region43: #{trainable_spectrogram.1} parent=5 // pred_region
      %s273 = ssub.s32 %s12, 1
      %s274 = smul.u32 16, %s22
      %s275 = ssub.s32 17, %s274
      %p276 = scmp.lt.s32.totalorder %s275, 16
      %s277 = scalar_select %p276, %s275, 16
      %s278 = smul.u32 8, %s277
      %s279 = smul.u32 %s278, 2
      %p280 = scmp.lt.s32.totalorder %s21, 1
      %s281 = scalar_select %p280, %s21, 1
      %p282 = scmp.lt.s32.totalorder %s274, 16
      %s283 = scalar_select %p282, %s274, 16
      %s284 = smul.addr %s283, 2
      %s285 = smul.addr %s281, 34
      %s286 = sadd.s32 %s284, %s285
      %s287 = smul.addr %s286, 8
      %s288 = scalar_lea.vmem %s0, %s287
      %p289 = pneg %p52
      %p290 = pneg %p49
      %s291 = sadd.s32 %s22, 1
      %s292 = smul.u32 %s291, 16
      %p293 = scmp.lt.s32.totalorder %s21, 1
      %s294 = scalar_select %p293, %s21, 1
      %p295 = scmp.lt.s32.totalorder %s292, 16
      %s296 = scalar_select %p295, %s292, 16
      %s297 = smul.addr %s296, 2
      %s298 = smul.addr %s294, 34
      %s299 = sadd.s32 %s297, %s298
      %s300 = smul.addr %s299, 8
      %s301 = scalar_lea.vmem %s1, %s300
      %p302 = pneg %p84
      %p303 = pneg %p81
      %p304 = pneg %p105
      %p305 = pneg %p102
      %p306 = pneg %p126
      %p307 = pneg %p123
      %p308 = pneg %p147
      %p309 = pneg %p144
      %p310 = pneg %p168
      %p311 = pneg %p165
      %p312 = pneg %p196
      %p313 = pneg %p193
      %p314 = scmp.lt.s32.totalorder %s21, 1
      %s315 = scalar_select %p314, %s21, 1
      %p316 = scmp.lt.s32.totalorder %s22, 0
      %s317 = scalar_select %p316, %s22, 0
      %s318 = smul.addr %s315, 4
      %s319 = sadd.s32 %s317, %s318
      %s320 = smul.addr %s319, 8
      %s321 = scalar_lea.vmem %s6, %s320
      %s322 = smul.u32 16, %s22
      %s323 = ssub.s32 17, %s322
      %p324 = scmp.lt.s32.totalorder %s323, 16
      %s325 = scalar_select %p324, %s323, 16
      %s326 = smul.u32 8, %s325
      %s327 = smul.u32 %s326, 2
      %p328 = scmp.lt.s32.totalorder %s21, 1
      %s329 = scalar_select %p328, %s21, 1
      %p330 = scmp.lt.s32.totalorder %s322, 16
      %s331 = scalar_select %p330, %s322, 16
      %s332 = smul.addr %s331, 2
      %s333 = smul.addr %s329, 34
      %s334 = sadd.s32 %s332, %s333
      %s335 = smul.addr %s334, 8
      %s336 = scalar_lea.vmem %s0, %s335
      %s337 = smul.u32 16, %s22
      %s338 = ssub.s32 17, %s337
      %p339 = scmp.lt.s32.totalorder %s338, 16
      %s340 = scalar_select %p339, %s338, 16
      %s341 = smul.u32 8, %s340
      %s342 = smul.u32 %s341, 2
      %s343 = sadd.s32 %s22, 1
      %s344 = smul.u32 %s343, 16
      %p345 = scmp.lt.s32.totalorder %s21, 1
      %s346 = scalar_select %p345, %s21, 1
      %p347 = scmp.lt.s32.totalorder %s344, 16
      %s348 = scalar_select %p347, %s344, 16
      %s349 = smul.addr %s348, 2
      %s350 = smul.addr %s346, 34
      %s351 = sadd.s32 %s349, %s350
      %s352 = smul.addr %s351, 8
      %s353 = scalar_lea.vmem %s1, %s352
      %s354 = sadd.s32 %s22, 1
      %s355 = smul.u32 %s354, 16
      %p356 = scmp.lt.s32.totalorder %s21, 1
      %s357 = scalar_select %p356, %s21, 1
      %p358 = scmp.lt.s32.totalorder %s22, 0
      %s359 = scalar_select %p358, %s22, 0
      %s360 = smul.addr %s357, 4
      %s361 = sadd.s32 %s359, %s360
      %s362 = smul.addr %s361, 8
      %s363 = scalar_lea.vmem %s6, %s362
      %v364 = vld [vmem:[%s336] sm:$0xff]
      %v365 = vld [vmem:[%s336 + $0x8] sm:$0xff]
      %v366 = vld [vmem:[%s336 + $0x10] sm:$0xff]
      %v367 = vld [vmem:[%s336 + $0x18] sm:$0xff]
      %v368 = vld [vmem:[%s336 + $0x20] sm:$0xff]
      %v369 = vld [vmem:[%s336 + $0x28] sm:$0xff]
      %v370 = vld [vmem:[%s336 + $0x30] sm:$0xff]
      %v371 = vld [vmem:[%s336 + $0x38] sm:$0xff]
      %v372 = vld [vmem:[%s336 + $0x40] sm:$0xff]
      %v373 = vld [vmem:[%s336 + $0x48] sm:$0xff]
      %v374 = vld [vmem:[%s336 + $0x50] sm:$0xff]
      %v375 = vld [vmem:[%s336 + $0x58] sm:$0xff]
      %v376 = vld [vmem:[%s336 + $0x60] sm:$0xff]
      %v377 = vld [vmem:[%s336 + $0x68] sm:$0xff]
      %v378 = vld [vmem:[%s336 + $0x70] sm:$0xff]
      %v379 = vld [vmem:[%s336 + $0x78] sm:$0xff]
      %v380 = vld [vmem:[%s336 + $0x80] sm:$0xff]
      %v381 = vld [vmem:[%s336 + $0x88] sm:$0xff]
      %v382 = vld [vmem:[%s336 + $0x90] sm:$0xff]
      %v383 = vld [vmem:[%s336 + $0x98] sm:$0xff]
      %v384 = vld [vmem:[%s336 + $0xa0] sm:$0xff]
      %v385 = vld [vmem:[%s336 + $0xa8] sm:$0xff]
      %v386 = vld [vmem:[%s336 + $0xb0] sm:$0xff]
      %v387 = vld [vmem:[%s336 + $0xb8] sm:$0xff]
      %v388 = vld [vmem:[%s336 + $0xc0] sm:$0xff]
      %v389 = vld [vmem:[%s336 + $0xc8] sm:$0xff]
      %v390 = vld [vmem:[%s336 + $0xd0] sm:$0xff]
      %v391 = vld [vmem:[%s336 + $0xd8] sm:$0xff]
      %v392 = vld [vmem:[%s336 + $0xe0] sm:$0xff]
      %v393 = vld [vmem:[%s336 + $0xe8] sm:$0xff]
      %v394 = vld [vmem:[%s336 + $0xf0] sm:$0xff]
      %v395 = vld [vmem:[%s336 + $0xf8] sm:$0xff]
      %v396 = vld [vmem:[%s2] sm:$0xff]
      %v397 = vld [vmem:[%s2 + $0x8] sm:$0xff]
      %v398 = vld [vmem:[%s2 + $0x10] sm:$0xff]
      %v399 = vld [vmem:[%s2 + $0x18] sm:$0xff]
      %v400 = vld [vmem:[%s2 + $0x20] sm:$0xff]
      %v401 = vld [vmem:[%s2 + $0x28] sm:$0xff]
      %v402 = vld [vmem:[%s2 + $0x30] sm:$0xff]
      %v403 = vld [vmem:[%s2 + $0x38] sm:$0xff]
      %v404 = vld [vmem:[%s2 + $0x40] sm:$0xff]
      %v405 = vld [vmem:[%s2 + $0x48] sm:$0xff]
      %v406 = vld [vmem:[%s2 + $0x50] sm:$0xff]
      %v407 = vld [vmem:[%s2 + $0x58] sm:$0xff]
      %v408 = vld [vmem:[%s2 + $0x60] sm:$0xff]
      %v409 = vld [vmem:[%s2 + $0x68] sm:$0xff]
      %v410 = vld [vmem:[%s2 + $0x70] sm:$0xff]
      %v411 = vld [vmem:[%s2 + $0x78] sm:$0xff]
      %v412 = vld [vmem:[%s2 + $0x80] sm:$0xff]
      %v413 = vld [vmem:[%s2 + $0x88] sm:$0xff]
      %v414 = vld [vmem:[%s2 + $0x90] sm:$0xff]
      %v415 = vld [vmem:[%s2 + $0x98] sm:$0xff]
      %v416 = vld [vmem:[%s3] sm:$0xff]
      %v417 = vld [vmem:[%s3 + $0x8] sm:$0xff]
      %v418 = vld [vmem:[%s3 + $0x10] sm:$0xff]
      %v419 = vld [vmem:[%s3 + $0x18] sm:$0xff]
      %v420 = vld [vmem:[%s3 + $0x20] sm:$0xff]
      %v421 = vld [vmem:[%s3 + $0x28] sm:$0xff]
      %v422 = vld [vmem:[%s3 + $0x30] sm:$0xff]
      %v423 = vld [vmem:[%s3 + $0x38] sm:$0xff]
      %v424 = vld [vmem:[%s3 + $0x40] sm:$0xff]
      %v425 = vld [vmem:[%s3 + $0x48] sm:$0xff]
      %v426 = vld [vmem:[%s3 + $0x50] sm:$0xff]
      %v427 = vld [vmem:[%s3 + $0x58] sm:$0xff]
      %v428 = vld [vmem:[%s3 + $0x60] sm:$0xff]
      %v429 = vld [vmem:[%s3 + $0x68] sm:$0xff]
      %v430 = vld [vmem:[%s3 + $0x70] sm:$0xff]
      %v431 = vld [vmem:[%s3 + $0x78] sm:$0xff]
      %v432 = vld [vmem:[%s3 + $0x80] sm:$0xff]
      %v433 = vld [vmem:[%s3 + $0x88] sm:$0xff]
      %v434 = vld [vmem:[%s3 + $0x90] sm:$0xff]
      %v435 = vld [vmem:[%s3 + $0x98] sm:$0xff]
      %vm436 = vcmask 261120
      %v438 = vsel %vm436, %v365, 0
      %v441 = vsel %vm436, %v367, 0
      %v444 = vsel %vm436, %v369, 0
      %v447 = vsel %vm436, %v371, 0
      %v450 = vsel %vm436, %v373, 0
      %v453 = vsel %vm436, %v375, 0
      %v456 = vsel %vm436, %v377, 0
      %v459 = vsel %vm436, %v379, 0
      %v462 = vsel %vm436, %v381, 0
      %v465 = vsel %vm436, %v383, 0
      %v468 = vsel %vm436, %v385, 0
      %v471 = vsel %vm436, %v387, 0
      %v474 = vsel %vm436, %v389, 0
      %v477 = vsel %vm436, %v391, 0
      %v480 = vsel %vm436, %v393, 0
      %v483 = vsel %vm436, %v395, 0
      %485 = vmatpush.msra.mxu0 %v431
      %486 = vmatpush.msra.mxu0 %v430
      %487 = vmatpush.msra.mxu0 %v429
      %488 = vmatpush.msra.mxu0 %v428
      %489 = vmatpush.msra.mxu0 %v427
      %490 = vmatpush.msra.mxu0 %v426
      %491 = vmatpush.msra.mxu0 %v425
      %492 = vmatpush.msra.mxu0 %v424
      %493 = vmatpush.msra.mxu0 %v423
      %494 = vmatpush.msra.mxu0 %v422
      %495 = vmatpush.msra.mxu0 %v421
      %496 = vmatpush.msra.mxu0 %v420
      %497 = vmatpush.msra.mxu0 %v419
      %498 = vmatpush.msra.mxu0 %v418
      %499 = vmatpush.msra.mxu0 %v417
      %500 = vmatpush.msra.mxu0 %v416
      %501 = vmatmul.f32.gmra.mxu0 %v364
      %v502 = vpop.f32.mrf.mxu0
      %v503 = vadd.f32 0.0, %v502
      %504 = vmatmul.f32.gmra.mxu0 %v366
      %v505 = vpop.f32.mrf.mxu0
      %v506 = vadd.f32 0.0, %v505
      %507 = vmatmul.f32.gmra.mxu0 %v368
      %v508 = vpop.f32.mrf.mxu0
      %v509 = vadd.f32 0.0, %v508
      %510 = vmatmul.f32.gmra.mxu0 %v370
      %v511 = vpop.f32.mrf.mxu0
      %v512 = vadd.f32 0.0, %v511
      %513 = vmatmul.f32.gmra.mxu0 %v372
      %v514 = vpop.f32.mrf.mxu0
      %v515 = vadd.f32 0.0, %v514
      %516 = vmatmul.f32.gmra.mxu0 %v374
      %v517 = vpop.f32.mrf.mxu0
      %v518 = vadd.f32 0.0, %v517
      %519 = vmatmul.f32.gmra.mxu0 %v376
      %v520 = vpop.f32.mrf.mxu0
      %v521 = vadd.f32 0.0, %v520
      %522 = vmatmul.f32.gmra.mxu0 %v378
      %v523 = vpop.f32.mrf.mxu0
      %v524 = vadd.f32 0.0, %v523
      %525 = vmatmul.f32.gmra.mxu0 %v380
      %v526 = vpop.f32.mrf.mxu0
      %v527 = vadd.f32 0.0, %v526
      %528 = vmatmul.f32.gmra.mxu0 %v382
      %v529 = vpop.f32.mrf.mxu0
      %v530 = vadd.f32 0.0, %v529
      %531 = vmatmul.f32.gmra.mxu0 %v384
      %v532 = vpop.f32.mrf.mxu0
      %v533 = vadd.f32 0.0, %v532
      %534 = vmatmul.f32.gmra.mxu0 %v386
      %v535 = vpop.f32.mrf.mxu0
      %v536 = vadd.f32 0.0, %v535
      %537 = vmatmul.f32.gmra.mxu0 %v388
      %v538 = vpop.f32.mrf.mxu0
      %v539 = vadd.f32 0.0, %v538
      %540 = vmatmul.f32.gmra.mxu0 %v390
      %v541 = vpop.f32.mrf.mxu0
      %v542 = vadd.f32 0.0, %v541
      %543 = vmatmul.f32.gmra.mxu0 %v392
      %v544 = vpop.f32.mrf.mxu0
      %v545 = vadd.f32 0.0, %v544
      %546 = vmatmul.f32.gmra.mxu0 %v394
      %v547 = vpop.f32.mrf.mxu0
      %v548 = vadd.f32 0.0, %v547
      %549 = vdwg.mxu0
      %550 = vmatpush.msra.mxu0 0.0
      %551 = vmatpush.msra.mxu0 0.0
      %552 = vmatpush.msra.mxu0 0.0
      %553 = vmatpush.msra.mxu0 0.0
      %554 = vmatpush.msra.mxu0 0.0
      %555 = vmatpush.msra.mxu0 0.0
      %556 = vmatpush.msra.mxu0 0.0
      %557 = vmatpush.msra.mxu0 0.0
      %558 = vmatpush.msra.mxu0 0.0
      %559 = vmatpush.msra.mxu0 0.0
      %560 = vmatpush.msra.mxu0 0.0
      %561 = vmatpush.msra.mxu0 0.0
      %562 = vmatpush.msra.mxu0 %v435
      %563 = vmatpush.msra.mxu0 %v434
      %564 = vmatpush.msra.mxu0 %v433
      %565 = vmatpush.msra.mxu0 %v432
      %566 = vmatmul.f32.gmra.mxu0 %v438
      %v567 = vpop.f32.mrf.mxu0
      %v568 = vadd.f32 %v503, %v567
      %569 = vmatmul.f32.gmra.mxu0 %v441
      %v570 = vpop.f32.mrf.mxu0
      %v571 = vadd.f32 %v506, %v570
      %572 = vmatmul.f32.gmra.mxu0 %v444
      %v573 = vpop.f32.mrf.mxu0
      %v574 = vadd.f32 %v509, %v573
      %575 = vmatmul.f32.gmra.mxu0 %v447
      %v576 = vpop.f32.mrf.mxu0
      %v577 = vadd.f32 %v512, %v576
      %578 = vmatmul.f32.gmra.mxu0 %v450
      %v579 = vpop.f32.mrf.mxu0
      %v580 = vadd.f32 %v515, %v579
      %581 = vmatmul.f32.gmra.mxu0 %v453
      %v582 = vpop.f32.mrf.mxu0
      %v583 = vadd.f32 %v518, %v582
      %584 = vmatmul.f32.gmra.mxu0 %v456
      %v585 = vpop.f32.mrf.mxu0
      %v586 = vadd.f32 %v521, %v585
      %587 = vmatmul.f32.gmra.mxu0 %v459
      %v588 = vpop.f32.mrf.mxu0
      %v589 = vadd.f32 %v524, %v588
      %590 = vmatmul.f32.gmra.mxu0 %v462
      %v591 = vpop.f32.mrf.mxu0
      %v592 = vadd.f32 %v527, %v591
      %593 = vmatmul.f32.gmra.mxu0 %v465
      %v594 = vpop.f32.mrf.mxu0
      %v595 = vadd.f32 %v530, %v594
      %596 = vmatmul.f32.gmra.mxu0 %v468
      %v597 = vpop.f32.mrf.mxu0
      %v598 = vadd.f32 %v533, %v597
      %599 = vmatmul.f32.gmra.mxu0 %v471
      %v600 = vpop.f32.mrf.mxu0
      %v601 = vadd.f32 %v536, %v600
      %602 = vmatmul.f32.gmra.mxu0 %v474
      %v603 = vpop.f32.mrf.mxu0
      %v604 = vadd.f32 %v539, %v603
      %605 = vmatmul.f32.gmra.mxu0 %v477
      %v606 = vpop.f32.mrf.mxu0
      %v607 = vadd.f32 %v542, %v606
      %608 = vmatmul.f32.gmra.mxu0 %v480
      %v609 = vpop.f32.mrf.mxu0
      %v610 = vadd.f32 %v545, %v609
      %611 = vmatmul.f32.gmra.mxu0 %v483
      %v612 = vpop.f32.mrf.mxu0
      %v613 = vadd.f32 %v548, %v612
      %614 = vdwg.mxu0
      %v615 = vld [vmem:[%s353] sm:$0xff]
      %v616 = vld [vmem:[%s353 + $0x8] sm:$0xff]
      %v618 = vsel %vm436, %v616, 0
      %620 = vmatpush.msra.mxu0 %v431
      %621 = vmatpush.msra.mxu0 %v430
      %622 = vmatpush.msra.mxu0 %v429
      %623 = vmatpush.msra.mxu0 %v428
      %624 = vmatpush.msra.mxu0 %v427
      %625 = vmatpush.msra.mxu0 %v426
      %626 = vmatpush.msra.mxu0 %v425
      %627 = vmatpush.msra.mxu0 %v424
      %628 = vmatpush.msra.mxu0 %v423
      %629 = vmatpush.msra.mxu0 %v422
      %630 = vmatpush.msra.mxu0 %v421
      %631 = vmatpush.msra.mxu0 %v420
      %632 = vmatpush.msra.mxu0 %v419
      %633 = vmatpush.msra.mxu0 %v418
      %634 = vmatpush.msra.mxu0 %v417
      %635 = vmatpush.msra.mxu0 %v416
      %636 = vmatmul.f32.gmra.mxu0 %v615
      %v637 = vpop.f32.mrf.mxu0
      %v638 = vadd.f32 0.0, %v637
      %639 = vdwg.mxu0
      %640 = vmatpush.msra.mxu0 0.0
      %641 = vmatpush.msra.mxu0 0.0
      %642 = vmatpush.msra.mxu0 0.0
      %643 = vmatpush.msra.mxu0 0.0
      %644 = vmatpush.msra.mxu0 0.0
      %645 = vmatpush.msra.mxu0 0.0
      %646 = vmatpush.msra.mxu0 0.0
      %647 = vmatpush.msra.mxu0 0.0
      %648 = vmatpush.msra.mxu0 0.0
      %649 = vmatpush.msra.mxu0 0.0
      %650 = vmatpush.msra.mxu0 0.0
      %651 = vmatpush.msra.mxu0 0.0
      %652 = vmatpush.msra.mxu0 %v435
      %653 = vmatpush.msra.mxu0 %v434
      %654 = vmatpush.msra.mxu0 %v433
      %655 = vmatpush.msra.mxu0 %v432
      %656 = vmatmul.f32.gmra.mxu0 %v618
      %v657 = vpop.f32.mrf.mxu0
      %v658 = vadd.f32 %v638, %v657
      %659 = vdwg.mxu0
      %vm677 = vcmask 1046528
      %v678 = vrot.slane %v568, 1
      %v679 = vrot.slane %v571, 1
      %v680 = vsel %vm677, %v678, %v679
      %v681 = vrot.slane %v574, 1
      %v682 = vsel %vm677, %v679, %v681
      %v683 = vrot.slane %v577, 1
      %v684 = vsel %vm677, %v681, %v683
      %v685 = vrot.slane %v580, 1
      %v686 = vsel %vm677, %v683, %v685
      %v687 = vrot.slane %v583, 1
      %v688 = vsel %vm677, %v685, %v687
      %v689 = vrot.slane %v586, 1
      %v690 = vsel %vm677, %v687, %v689
      %v691 = vrot.slane %v589, 1
      %v692 = vsel %vm677, %v689, %v691
      %v693 = vrot.slane %v592, 1
      %v694 = vsel %vm677, %v691, %v693
      %v695 = vrot.slane %v595, 1
      %v696 = vsel %vm677, %v693, %v695
      %v697 = vrot.slane %v598, 1
      %v698 = vsel %vm677, %v695, %v697
      %v699 = vrot.slane %v601, 1
      %v700 = vsel %vm677, %v697, %v699
      %v701 = vrot.slane %v604, 1
      %v702 = vsel %vm677, %v699, %v701
      %v703 = vrot.slane %v607, 1
      %v704 = vsel %vm677, %v701, %v703
      %v705 = vrot.slane %v610, 1
      %v706 = vsel %vm677, %v703, %v705
      %v707 = vrot.slane %v613, 1
      %v708 = vsel %vm677, %v705, %v707
      %v709 = vrot.slane %v658, 1
      %v710 = vsel %vm677, %v707, %v709
      %727 = vmatpush.msra.mxu0 %v411
      %728 = vmatpush.msra.mxu0 %v410
      %729 = vmatpush.msra.mxu0 %v409
      %730 = vmatpush.msra.mxu0 %v408
      %731 = vmatpush.msra.mxu0 %v407
      %732 = vmatpush.msra.mxu0 %v406
      %733 = vmatpush.msra.mxu0 %v405
      %734 = vmatpush.msra.mxu0 %v404
      %735 = vmatpush.msra.mxu0 %v403
      %736 = vmatpush.msra.mxu0 %v402
      %737 = vmatpush.msra.mxu0 %v401
      %738 = vmatpush.msra.mxu0 %v400
      %739 = vmatpush.msra.mxu0 %v399
      %740 = vmatpush.msra.mxu0 %v398
      %741 = vmatpush.msra.mxu0 %v397
      %742 = vmatpush.msra.mxu0 %v396
      %743 = vmatmul.f32.gmra.mxu0 %v364
      %v744 = vpop.f32.mrf.mxu0
      %v745 = vadd.f32 %v680, %v744
      %746 = vmatmul.f32.gmra.mxu0 %v366
      %v747 = vpop.f32.mrf.mxu0
      %v748 = vadd.f32 %v682, %v747
      %749 = vmatmul.f32.gmra.mxu0 %v368
      %v750 = vpop.f32.mrf.mxu0
      %v751 = vadd.f32 %v684, %v750
      %752 = vmatmul.f32.gmra.mxu0 %v370
      %v753 = vpop.f32.mrf.mxu0
      %v754 = vadd.f32 %v686, %v753
      %755 = vmatmul.f32.gmra.mxu0 %v372
      %v756 = vpop.f32.mrf.mxu0
      %v757 = vadd.f32 %v688, %v756
      %758 = vmatmul.f32.gmra.mxu0 %v374
      %v759 = vpop.f32.mrf.mxu0
      %v760 = vadd.f32 %v690, %v759
      %761 = vmatmul.f32.gmra.mxu0 %v376
      %v762 = vpop.f32.mrf.mxu0
      %v763 = vadd.f32 %v692, %v762
      %764 = vmatmul.f32.gmra.mxu0 %v378
      %v765 = vpop.f32.mrf.mxu0
      %v766 = vadd.f32 %v694, %v765
      %767 = vmatmul.f32.gmra.mxu0 %v380
      %v768 = vpop.f32.mrf.mxu0
      %v769 = vadd.f32 %v696, %v768
      %770 = vmatmul.f32.gmra.mxu0 %v382
      %v771 = vpop.f32.mrf.mxu0
      %v772 = vadd.f32 %v698, %v771
      %773 = vmatmul.f32.gmra.mxu0 %v384
      %v774 = vpop.f32.mrf.mxu0
      %v775 = vadd.f32 %v700, %v774
      %776 = vmatmul.f32.gmra.mxu0 %v386
      %v777 = vpop.f32.mrf.mxu0
      %v778 = vadd.f32 %v702, %v777
      %779 = vmatmul.f32.gmra.mxu0 %v388
      %v780 = vpop.f32.mrf.mxu0
      %v781 = vadd.f32 %v704, %v780
      %782 = vmatmul.f32.gmra.mxu0 %v390
      %v783 = vpop.f32.mrf.mxu0
      %v784 = vadd.f32 %v706, %v783
      %785 = vmatmul.f32.gmra.mxu0 %v392
      %v786 = vpop.f32.mrf.mxu0
      %v787 = vadd.f32 %v708, %v786
      %788 = vmatmul.f32.gmra.mxu0 %v394
      %v789 = vpop.f32.mrf.mxu0
      %v790 = vadd.f32 %v710, %v789
      %791 = vdwg.mxu0
      %792 = vmatpush.msra.mxu0 0.0
      %793 = vmatpush.msra.mxu0 0.0
      %794 = vmatpush.msra.mxu0 0.0
      %795 = vmatpush.msra.mxu0 0.0
      %796 = vmatpush.msra.mxu0 0.0
      %797 = vmatpush.msra.mxu0 0.0
      %798 = vmatpush.msra.mxu0 0.0
      %799 = vmatpush.msra.mxu0 0.0
      %800 = vmatpush.msra.mxu0 0.0
      %801 = vmatpush.msra.mxu0 0.0
      %802 = vmatpush.msra.mxu0 0.0
      %803 = vmatpush.msra.mxu0 0.0
      %804 = vmatpush.msra.mxu0 %v415
      %805 = vmatpush.msra.mxu0 %v414
      %806 = vmatpush.msra.mxu0 %v413
      %807 = vmatpush.msra.mxu0 %v412
      %808 = vmatmul.f32.gmra.mxu0 %v438
      %v809 = vpop.f32.mrf.mxu0
      %v810 = vadd.f32 %v745, %v809
      %811 = vmatmul.f32.gmra.mxu0 %v441
      %v812 = vpop.f32.mrf.mxu0
      %v813 = vadd.f32 %v748, %v812
      %814 = vmatmul.f32.gmra.mxu0 %v444
      %v815 = vpop.f32.mrf.mxu0
      %v816 = vadd.f32 %v751, %v815
      %817 = vmatmul.f32.gmra.mxu0 %v447
      %v818 = vpop.f32.mrf.mxu0
      %v819 = vadd.f32 %v754, %v818
      %820 = vmatmul.f32.gmra.mxu0 %v450
      %v821 = vpop.f32.mrf.mxu0
      %v822 = vadd.f32 %v757, %v821
      %823 = vmatmul.f32.gmra.mxu0 %v453
      %v824 = vpop.f32.mrf.mxu0
      %v825 = vadd.f32 %v760, %v824
      %826 = vmatmul.f32.gmra.mxu0 %v456
      %v827 = vpop.f32.mrf.mxu0
      %v828 = vadd.f32 %v763, %v827
      %829 = vmatmul.f32.gmra.mxu0 %v459
      %v830 = vpop.f32.mrf.mxu0
      %v831 = vadd.f32 %v766, %v830
      %832 = vmatmul.f32.gmra.mxu0 %v462
      %v833 = vpop.f32.mrf.mxu0
      %v834 = vadd.f32 %v769, %v833
      %835 = vmatmul.f32.gmra.mxu0 %v465
      %v836 = vpop.f32.mrf.mxu0
      %v837 = vadd.f32 %v772, %v836
      %838 = vmatmul.f32.gmra.mxu0 %v468
      %v839 = vpop.f32.mrf.mxu0
      %v840 = vadd.f32 %v775, %v839
      %841 = vmatmul.f32.gmra.mxu0 %v471
      %v842 = vpop.f32.mrf.mxu0
      %v843 = vadd.f32 %v778, %v842
      %844 = vmatmul.f32.gmra.mxu0 %v474
      %v845 = vpop.f32.mrf.mxu0
      %v846 = vadd.f32 %v781, %v845
      %847 = vmatmul.f32.gmra.mxu0 %v477
      %v848 = vpop.f32.mrf.mxu0
      %v849 = vadd.f32 %v784, %v848
      %850 = vmatmul.f32.gmra.mxu0 %v480
      %v851 = vpop.f32.mrf.mxu0
      %v852 = vadd.f32 %v787, %v851
      %853 = vmatmul.f32.gmra.mxu0 %v483
      %v854 = vpop.f32.mrf.mxu0
      %v855 = vadd.f32 %v790, %v854
      %856 = vdwg.mxu0
      %v857 = vmax.f32 %v810, 0.0
      %v858 = vmax.f32 %v813, 0.0
      %v859 = vmax.f32 %v816, 0.0
      %v860 = vmax.f32 %v819, 0.0
      %v861 = vmax.f32 %v822, 0.0
      %v862 = vmax.f32 %v825, 0.0
      %v863 = vmax.f32 %v828, 0.0
      %v864 = vmax.f32 %v831, 0.0
      %v865 = vmax.f32 %v834, 0.0
      %v866 = vmax.f32 %v837, 0.0
      %v867 = vmax.f32 %v840, 0.0
      %v868 = vmax.f32 %v843, 0.0
      %v869 = vmax.f32 %v846, 0.0
      %v870 = vmax.f32 %v849, 0.0
      %v871 = vmax.f32 %v852, 0.0
      %v872 = vmax.f32 %v855, 0.0
      %v873 = vld [vmem:[%s4] sm:$0xff]
      %v874 = vld [vmem:[%s4 + $0x8] sm:$0xff]
      %vm875 = vcmask 130048
      %v877 = vsel %vm875, %v857, 0
      %v880 = vsel %vm875, %v858, 0
      %v883 = vsel %vm875, %v859, 0
      %v886 = vsel %vm875, %v860, 0
      %v889 = vsel %vm875, %v861, 0
      %v892 = vsel %vm875, %v862, 0
      %v895 = vsel %vm875, %v863, 0
      %v898 = vsel %vm875, %v864, 0
      %v901 = vsel %vm875, %v865, 0
      %v904 = vsel %vm875, %v866, 0
      %v907 = vsel %vm875, %v867, 0
      %v910 = vsel %vm875, %v868, 0
      %v913 = vsel %vm875, %v869, 0
      %v916 = vsel %vm875, %v870, 0
      %v919 = vsel %vm875, %v871, 0
      %v922 = vsel %vm875, %v872, 0
      %924 = vmatpush.msra.mxu0 0.0
      %925 = vmatpush.msra.mxu0 0.0
      %926 = vmatpush.msra.mxu0 0.0
      %927 = vmatpush.msra.mxu0 0.0
      %928 = vmatpush.msra.mxu0 0.0
      %929 = vmatpush.msra.mxu0 0.0
      %930 = vmatpush.msra.mxu0 0.0
      %931 = vmatpush.msra.mxu0 0.0
      %932 = vmatpush.msra.mxu0 0.0
      %933 = vmatpush.msra.mxu0 0.0
      %934 = vmatpush.msra.mxu0 0.0
      %935 = vmatpush.msra.mxu0 0.0
      %936 = vmatpush.msra.mxu0 0.0
      %937 = vmatpush.msra.mxu0 0.0
      %938 = vmatpush.msra.mxu0 %v874
      %939 = vmatpush.msra.mxu0 %v873
      %940 = vmatmul.f32.gmra.mxu0 %v877
      %v941 = vpop.f32.mrf.mxu0
      %v942 = vadd.f32 0.0, %v941
      %943 = vmatmul.f32.gmra.mxu0 %v880
      %v944 = vpop.f32.mrf.mxu0
      %v945 = vadd.f32 0.0, %v944
      %946 = vmatmul.f32.gmra.mxu0 %v883
      %v947 = vpop.f32.mrf.mxu0
      %v948 = vadd.f32 0.0, %v947
      %949 = vmatmul.f32.gmra.mxu0 %v886
      %v950 = vpop.f32.mrf.mxu0
      %v951 = vadd.f32 0.0, %v950
      %952 = vmatmul.f32.gmra.mxu0 %v889
      %v953 = vpop.f32.mrf.mxu0
      %v954 = vadd.f32 0.0, %v953
      %955 = vmatmul.f32.gmra.mxu0 %v892
      %v956 = vpop.f32.mrf.mxu0
      %v957 = vadd.f32 0.0, %v956
      %958 = vmatmul.f32.gmra.mxu0 %v895
      %v959 = vpop.f32.mrf.mxu0
      %v960 = vadd.f32 0.0, %v959
      %961 = vmatmul.f32.gmra.mxu0 %v898
      %v962 = vpop.f32.mrf.mxu0
      %v963 = vadd.f32 0.0, %v962
      %964 = vmatmul.f32.gmra.mxu0 %v901
      %v965 = vpop.f32.mrf.mxu0
      %v966 = vadd.f32 0.0, %v965
      %967 = vmatmul.f32.gmra.mxu0 %v904
      %v968 = vpop.f32.mrf.mxu0
      %v969 = vadd.f32 0.0, %v968
      %970 = vmatmul.f32.gmra.mxu0 %v907
      %v971 = vpop.f32.mrf.mxu0
      %v972 = vadd.f32 0.0, %v971
      %973 = vmatmul.f32.gmra.mxu0 %v910
      %v974 = vpop.f32.mrf.mxu0
      %v975 = vadd.f32 0.0, %v974
      %976 = vmatmul.f32.gmra.mxu0 %v913
      %v977 = vpop.f32.mrf.mxu0
      %v978 = vadd.f32 0.0, %v977
      %979 = vmatmul.f32.gmra.mxu0 %v916
      %v980 = vpop.f32.mrf.mxu0
      %v981 = vadd.f32 0.0, %v980
      %982 = vmatmul.f32.gmra.mxu0 %v919
      %v983 = vpop.f32.mrf.mxu0
      %v984 = vadd.f32 0.0, %v983
      %985 = vmatmul.f32.gmra.mxu0 %v922
      %v986 = vpop.f32.mrf.mxu0
      %v987 = vadd.f32 0.0, %v986
      %988 = vdwg.mxu0
      %v989 = vmax.f32 %v942, 0.0
      %v990 = vmax.f32 %v945, 0.0
      %v991 = vmax.f32 %v948, 0.0
      %v992 = vmax.f32 %v951, 0.0
      %v993 = vmax.f32 %v954, 0.0
      %v994 = vmax.f32 %v957, 0.0
      %v995 = vmax.f32 %v960, 0.0
      %v996 = vmax.f32 %v963, 0.0
      %v997 = vmax.f32 %v966, 0.0
      %v998 = vmax.f32 %v969, 0.0
      %v999 = vmax.f32 %v972, 0.0
      %v1000 = vmax.f32 %v975, 0.0
      %v1001 = vmax.f32 %v978, 0.0
      %v1002 = vmax.f32 %v981, 0.0
      %v1003 = vmax.f32 %v984, 0.0
      %v1004 = vmax.f32 %v987, 0.0
      %v1005 = vld [vmem:[%s5] sm:$0xff]
      %vm1006 = vcmask 64512
      %v1008 = vsel %vm1006, %v989, 0
      %v1011 = vsel %vm1006, %v990, 0
      %v1014 = vsel %vm1006, %v991, 0
      %v1017 = vsel %vm1006, %v992, 0
      %v1020 = vsel %vm1006, %v993, 0
      %v1023 = vsel %vm1006, %v994, 0
      %v1026 = vsel %vm1006, %v995, 0
      %v1029 = vsel %vm1006, %v996, 0
      %v1032 = vsel %vm1006, %v997, 0
      %v1035 = vsel %vm1006, %v998, 0
      %v1038 = vsel %vm1006, %v999, 0
      %v1041 = vsel %vm1006, %v1000, 0
      %v1044 = vsel %vm1006, %v1001, 0
      %v1047 = vsel %vm1006, %v1002, 0
      %v1050 = vsel %vm1006, %v1003, 0
      %v1053 = vsel %vm1006, %v1004, 0
      %1055 = vmatpush.msra.mxu0 0.0
      %1056 = vmatpush.msra.mxu0 0.0
      %1057 = vmatpush.msra.mxu0 0.0
      %1058 = vmatpush.msra.mxu0 0.0
      %1059 = vmatpush.msra.mxu0 0.0
      %1060 = vmatpush.msra.mxu0 0.0
      %1061 = vmatpush.msra.mxu0 0.0
      %1062 = vmatpush.msra.mxu0 0.0
      %1063 = vmatpush.msra.mxu0 0.0
      %1064 = vmatpush.msra.mxu0 0.0
      %1065 = vmatpush.msra.mxu0 0.0
      %1066 = vmatpush.msra.mxu0 0.0
      %1067 = vmatpush.msra.mxu0 0.0
      %1068 = vmatpush.msra.mxu0 0.0
      %1069 = vmatpush.msra.mxu0 0.0
      %1070 = vmatpush.msra.mxu0 %v1005
      %1071 = vmatmul.f32.gmra.mxu0 %v1008
      %v1072 = vpop.f32.mrf.mxu0
      %v1073 = vadd.f32 0.0, %v1072
      %1074 = vmatmul.f32.gmra.mxu0 %v1011
      %v1075 = vpop.f32.mrf.mxu0
      %v1076 = vadd.f32 0.0, %v1075
      %1077 = vmatmul.f32.gmra.mxu0 %v1014
      %v1078 = vpop.f32.mrf.mxu0
      %v1079 = vadd.f32 0.0, %v1078
      %1080 = vmatmul.f32.gmra.mxu0 %v1017
      %v1081 = vpop.f32.mrf.mxu0
      %v1082 = vadd.f32 0.0, %v1081
      %1083 = vmatmul.f32.gmra.mxu0 %v1020
      %v1084 = vpop.f32.mrf.mxu0
      %v1085 = vadd.f32 0.0, %v1084
      %1086 = vmatmul.f32.gmra.mxu0 %v1023
      %v1087 = vpop.f32.mrf.mxu0
      %v1088 = vadd.f32 0.0, %v1087
      %1089 = vmatmul.f32.gmra.mxu0 %v1026
      %v1090 = vpop.f32.mrf.mxu0
      %v1091 = vadd.f32 0.0, %v1090
      %1092 = vmatmul.f32.gmra.mxu0 %v1029
      %v1093 = vpop.f32.mrf.mxu0
      %v1094 = vadd.f32 0.0, %v1093
      %1095 = vmatmul.f32.gmra.mxu0 %v1032
      %v1096 = vpop.f32.mrf.mxu0
      %v1097 = vadd.f32 0.0, %v1096
      %1098 = vmatmul.f32.gmra.mxu0 %v1035
      %v1099 = vpop.f32.mrf.mxu0
      %v1100 = vadd.f32 0.0, %v1099
      %1101 = vmatmul.f32.gmra.mxu0 %v1038
      %v1102 = vpop.f32.mrf.mxu0
      %v1103 = vadd.f32 0.0, %v1102
      %1104 = vmatmul.f32.gmra.mxu0 %v1041
      %v1105 = vpop.f32.mrf.mxu0
      %v1106 = vadd.f32 0.0, %v1105
      %1107 = vmatmul.f32.gmra.mxu0 %v1044
      %v1108 = vpop.f32.mrf.mxu0
      %v1109 = vadd.f32 0.0, %v1108
      %1110 = vmatmul.f32.gmra.mxu0 %v1047
      %v1111 = vpop.f32.mrf.mxu0
      %v1112 = vadd.f32 0.0, %v1111
      %1113 = vmatmul.f32.gmra.mxu0 %v1050
      %v1114 = vpop.f32.mrf.mxu0
      %v1115 = vadd.f32 0.0, %v1114
      %1116 = vmatmul.f32.gmra.mxu0 %v1053
      %v1117 = vpop.f32.mrf.mxu0
      %v1118 = vadd.f32 0.0, %v1117
      %1119 = vdwg.mxu0
      %v1120 = vmax.f32 %v1073, 0.0
      %v1121 = vmax.f32 %v1076, 0.0
      %v1122 = vmax.f32 %v1079, 0.0
      %v1123 = vmax.f32 %v1082, 0.0
      %v1124 = vmax.f32 %v1085, 0.0
      %v1125 = vmax.f32 %v1088, 0.0
      %v1126 = vmax.f32 %v1091, 0.0
      %v1127 = vmax.f32 %v1094, 0.0
      %v1128 = vmax.f32 %v1097, 0.0
      %v1129 = vmax.f32 %v1100, 0.0
      %v1130 = vmax.f32 %v1103, 0.0
      %v1131 = vmax.f32 %v1106, 0.0
      %v1132 = vmax.f32 %v1109, 0.0
      %v1133 = vmax.f32 %v1112, 0.0
      %v1134 = vmax.f32 %v1115, 0.0
      %v1135 = vmax.f32 %v1118, 0.0
      %1136 = vxpose.xlu0.b32.start [1/16] %v1120, 128
      %1137 = vxpose.xlu0.b32.cont [2/16] %v1121, 128
      %1138 = vxpose.xlu0.b32.cont [3/16] %v1122, 128
      %1139 = vxpose.xlu0.b32.cont [4/16] %v1123, 128
      %1140 = vxpose.xlu0.b32.cont [5/16] %v1124, 128
      %1141 = vxpose.xlu0.b32.cont [6/16] %v1125, 128
      %1142 = vxpose.xlu0.b32.cont [7/16] %v1126, 128
      %1143 = vxpose.xlu0.b32.cont [8/16] %v1127, 128
      %1144 = vxpose.xlu0.b32.cont [9/16] %v1128, 128
      %1145 = vxpose.xlu0.b32.cont [10/16] %v1129, 128
      %1146 = vxpose.xlu0.b32.cont [11/16] %v1130, 128
      %1147 = vxpose.xlu0.b32.cont [12/16] %v1131, 128
      %1148 = vxpose.xlu0.b32.cont [13/16] %v1132, 128
      %1149 = vxpose.xlu0.b32.cont [14/16] %v1133, 128
      %1150 = vxpose.xlu0.b32.cont [15/16] %v1134, 128
      %1151 = vxpose.xlu0.b32.end [16/16] %v1135, 128
      %v1152 = vpop.trf.xlu0
      %v1153 = vpop.trf.xlu0
      %v1154 = vpop.trf.xlu0
      %v1155 = vpop.trf.xlu0
      %v1156 = vpop.trf.xlu0
      %v1157 = vpop.trf.xlu0
      %v1158 = vpop.trf.xlu0
      %v1159 = vpop.trf.xlu0
      %v1160 = vpop.trf.xlu0
      %v1161 = vpop.trf.xlu0
      %v1162 = vpop.trf.xlu0
      %v1163 = vpop.trf.xlu0
      %v1164 = vpop.trf.xlu0
      %v1165 = vpop.trf.xlu0
      %v1166 = vpop.trf.xlu0
      %v1167 = vpop.trf.xlu0
      %1168 = vst [vmem:[%s363] sm:$0xff] %v1152
      %1169 = vst [vmem:[%s363 + $0x8] sm:$0xff] %v1153
      %1170 = vst [vmem:[%s363 + $0x10] sm:$0xff] %v1154
      %1171 = vst [vmem:[%s363 + $0x18] sm:$0xff] %v1155
      %p1172 = scmp.lt.s32.totalorder %s21, 1
      %s1173 = scalar_select %p1172, %s21, 1
      %p1174 = scmp.lt.s32.totalorder %s22, 0
      %s1175 = scalar_select %p1174, %s22, 0
      %s1176 = smul.addr %s1173, 4
      %s1177 = sadd.s32 %s1175, %s1176
      %s1178 = smul.addr %s1177, 8
      %s1179 = scalar_lea.vmem %s6, %s1178
      // Predicated region
      $region45: #{trainable_spectrogram.1} parent=43 // pred_check
        %p1180 = pneg %p193
      $region46: #{trainable_spectrogram.1} parent=43 // pred_check_branch
        %1182 = sbr.rel (%p1180) target = $region48
      $region47: #{trainable_spectrogram.1} parent=43 // pred_region
        _
      $region48: #{trainable_spectrogram.1} parent=43 // pred_fallthru
        _
    $region44: #{trainable_spectrogram.1} parent=5 // pred_fallthru
      _
    %p1183 = scmp.le.s32.totalorder 2, %s12
    // Predicated region
    $region49: #{trainable_spectrogram.1} parent=5 // pred_check
      %p1184 = pneg %p1183
    $region50: #{trainable_spectrogram.1} parent=5 // pred_check_branch
      %1186 = sbr.rel (%p1184) target = $region52
    $region51: #{trainable_spectrogram.1} parent=5 // pred_region
      %s1187 = ssub.s32 %s12, 2
      // Predicated region
      $region53: #{trainable_spectrogram.1} parent=51 // pred_check
        %p1188 = pneg %p199
      $region54: #{trainable_spectrogram.1} parent=51 // pred_check_branch
        %1190 = sbr.rel (%p1188) target = $region56
      $region55: #{trainable_spectrogram.1} parent=51 // pred_region
        %p1191 = scmp.lt.s32.totalorder %s23, 1
        %s1192 = scalar_select %p1191, %s23, 1
        %p1193 = scmp.lt.s32.totalorder %s24, 0
        %s1194 = scalar_select %p1193, %s24, 0
        %s1195 = smul.addr %s1192, 4
        %s1196 = sadd.s32 %s1194, %s1195
        %s1197 = smul.addr %s1196, 8
        %s1198 = scalar_lea.vmem %s6, %s1197
      $region56: #{trainable_spectrogram.1} parent=51 // pred_fallthru
        _
    $region52: #{trainable_spectrogram.1} parent=5 // pred_fallthru
      _
  $region6: #{trainable_spectrogram.1} parent=0 // loop_footer
    %s16 = sadd.s32 1, %s12
  $region7: #{trainable_spectrogram.1} parent=0 // loop_footer_branch
    %11 = sbr.rel target = $region3
  $region8: #{trainable_spectrogram.1} parent=0 // loop_exit
    _

</llo_original>
